<compile_context>
chip_gen: v5e
topology: v5e:2x2
jax: 0.10.0
libtpu: 0.0.40
codegen_flags: <defaults>
</compile_context>

<pallas_src>
import math
import jax
import jax.numpy as jnp
from jax.experimental import pallas as pl
from jax.experimental.pallas import tpu as pltpu

_SUBLANES = 8            # f32 sublane tile height
_LANES = 128             # lane width
_MAX_BLOCK_COLS = 16384  # (8, 16384) f32 block = 512 KiB per pipeline buffer


def _poly3_kernel(coef_ref, x_ref, o_ref):
    # coef_ref: SMEM (4,) float32 -> a, b, c, d scalars
    # x_ref, o_ref: VMEM (8, BC) lane-dense tiles
    a = coef_ref[0]
    b = coef_ref[1]
    c = coef_ref[2]
    d = coef_ref[3]
    x = x_ref[...].astype(jnp.float32)
    # Horner form: 3 mul + 3 add per element, all on the VPU.
    y = a + x * (b + x * (c + x * d))
    o_ref[...] = y.astype(o_ref.dtype)


def polynomial3(x: jax.Array, a, b, c, d) -> jax.Array:
    """Elementwise cubic polynomial, matching Polynomial3.forward semantics."""
    assert x.ndim == 1, "expects a 1-D input like torch.linspace output"
    n = x.shape[0]

    # Pad N up to a multiple of 8*128, lay out as (8, cols) with cols a
    # multiple of 128, then pick a block width and pad cols so the grid tiles
    # evenly (no partial blocks).
    min_tile = _SUBLANES * _LANES                      # 1024 f32 elements
    cols_min = pl.cdiv(n, min_tile) * _LANES           # multiple of 128
    block_cols = min(_MAX_BLOCK_COLS, cols_min)        # multiple of 128
    cols = pl.cdiv(cols_min, block_cols) * block_cols
    n_pad = cols * _SUBLANES
    grid = cols // block_cols

    x_p = jnp.pad(x, (0, n_pad - n))
    x2d = x_p.reshape(_SUBLANES, cols)

    # Coefficients always float32 (SMEM scalars), independent of x dtype.
    coef = jnp.asarray([a, b, c, d], dtype=jnp.float32)

    out2d = pl.pallas_call(
        _poly3_kernel,
        out_shape=jax.ShapeDtypeStruct((_SUBLANES, cols), x.dtype),
        grid=(grid,),
        in_specs=[
            pl.BlockSpec(memory_space=pltpu.SMEM),                   # coefficients
            pl.BlockSpec((_SUBLANES, block_cols), lambda i: (0, i)),  # x tile
        ],
        out_specs=pl.BlockSpec((_SUBLANES, block_cols), lambda i: (0, i)),
        compiler_params=pltpu.CompilerParams(
            dimension_semantics=("parallel",)),
    )(coef, x2d)

    return out2d.reshape(n_pad)[:n]


if __name__ == "__main__":
    # Deterministic "parameters" (the PyTorch module uses torch.randn(()) x4).
    key = jax.random.PRNGKey(0)
    ka, kb, kc, kd = jax.random.split(key, 4)
    a = jax.random.normal(ka, (), dtype=jnp.float32)
    b = jax.random.normal(kb, (), dtype=jnp.float32)
    c = jax.random.normal(kc, (), dtype=jnp.float32)
    d = jax.random.normal(kd, (), dtype=jnp.float32)

    # Input matching the script: x = linspace(-pi, pi, 2000)
    x = jnp.linspace(-math.pi, math.pi, 2000, dtype=jnp.float32)

    y = polynomial3(x, a, b, c, d)
    y = jax.block_until_ready(y)

    # Reference check in plain JAX (expanded form like the PyTorch module).
    y_ref = a + b * x + c * x**2 + d * x**3
    assert y.shape == x.shape and y.dtype == x.dtype
    assert jnp.allclose(y, y_ref, rtol=1e-5, atol=1e-5)

    print("KERNEL_OK")
</pallas_src>

<mosaic_0001>
module attributes {stable_mosaic.version = 11 : i64} {
  func.func @_poly3_kernel(%arg0: i32, %arg1: memref<4xf32, #tpu.memory_space<smem>>, %arg2: memref<8x256xf32, #tpu.memory_space<vmem>>, %arg3: memref<8x256xf32, #tpu.memory_space<vmem>>) attributes {dimension_semantics = [#tpu.dimension_semantics<parallel>], iteration_bounds = array<i64: 1>, scalar_prefetch = 0 : i64, scratch_operands = 0 : i64, tpu.core_type = #tpu.core_type<tc>, window_params = [{transform_indices = @transform_0, window_bounds = array<i64: 4>}, {transform_indices = @transform_1, window_bounds = array<i64: 8, 256>}, {transform_indices = @transform_2, window_bounds = array<i64: 8, 256>}]} {
    %c0 = arith.constant 0 : index
    %0 = memref.load %arg1[%c0] : memref<4xf32, #tpu.memory_space<smem>>
    %c1 = arith.constant 1 : index
    %1 = memref.load %arg1[%c1] : memref<4xf32, #tpu.memory_space<smem>>
    %c2 = arith.constant 2 : index
    %2 = memref.load %arg1[%c2] : memref<4xf32, #tpu.memory_space<smem>>
    %c3 = arith.constant 3 : index
    %3 = memref.load %arg1[%c3] : memref<4xf32, #tpu.memory_space<smem>>
    %c0_0 = arith.constant 0 : index
    %c0_1 = arith.constant 0 : index
    %4 = vector.load %arg2[%c0_0, %c0_1] : memref<8x256xf32, #tpu.memory_space<vmem>>, vector<8x256xf32>
    %5 = vector.broadcast %3 : f32 to vector<8x256xf32>
    %6 = arith.mulf %4, %5 : vector<8x256xf32>
    %7 = vector.broadcast %2 : f32 to vector<8x256xf32>
    %8 = arith.addf %7, %6 : vector<8x256xf32>
    %9 = arith.mulf %4, %8 : vector<8x256xf32>
    %10 = vector.broadcast %1 : f32 to vector<8x256xf32>
    %11 = arith.addf %10, %9 : vector<8x256xf32>
    %12 = arith.mulf %4, %11 : vector<8x256xf32>
    %13 = vector.broadcast %0 : f32 to vector<8x256xf32>
    %14 = arith.addf %13, %12 : vector<8x256xf32>
    %c0_2 = arith.constant 0 : index
    %c0_3 = arith.constant 0 : index
    %15 = vector.load %arg3[%c0_2, %c0_3] : memref<8x256xf32, #tpu.memory_space<vmem>>, vector<8x256xf32>
    tpu.vector_store %arg3[%c0_2, %c0_3], %14 {strides = array<i32>} : memref<8x256xf32, #tpu.memory_space<vmem>>, vector<8x256xf32>,
    return
  }
  func.func @transform_0(%arg0: i32) -> i32 {
    %c0_i32 = arith.constant 0 : i32
    %c0_i32_0 = arith.constant 0 : i32
    return %c0_i32 : i32
  }
  func.func @transform_1(%arg0: i32) -> (i32, i32) {
    %c0_i32 = arith.constant 0 : i32
    %c0_i32_0 = arith.constant 0 : i32
    return %c0_i32, %arg0 : i32, i32
  }
  func.func @transform_2(%arg0: i32) -> (i32, i32) {
    %c0_i32 = arith.constant 0 : i32
    %c0_i32_0 = arith.constant 0 : i32
    return %c0_i32, %arg0 : i32, i32
  }
}

</mosaic_0001>

<llo_original>
// kernel: tpu_custom_call.1
$region0: #{tpu_custom_call.1}
  #allocation0 [shape = 'u32[]', space=smem, size = 0x4, offset = 0x4, fixed_abs, tag = 'smem constant byte address 0x4 - core index']
  #allocation1 [shape = 'u32[72,128]{1,0:T(1,128)}', space=vmem, size = 0x9000, scoped, tag = 'internal scratch']
  %s0 = inlined_call_operand.hbm [shape: f32[4], index: 0, kind: input, shape index: {}]
  %s1 = inlined_call_operand.hbm [shape: f32[8,256], index: 1, kind: input, shape index: {}]
  %s2 = inlined_call_operand.hbm [shape: f32[8,256], index: 2, kind: output, shape index: {}]
  %s3 = sld [smem:[#allocation0]]
  $region26: #{tpu_custom_call.1} parent=0
    _
  %s5 = ssub.s32 1, %s3
  %s6 = scalar_select 0, %s5, %s3
  $region1: #{tpu_custom_call.1} parent=0
    #allocation2 [shape = 'u8[512]{0}', space=smem, size = 0x200, scoped, tag = 'input window, operand 0, single buffered']
    #allocation3 [shape = 's32[1]{0}', space=sflag, size = 0x4, scoped, tag = 'scoped memory for tpu_custom_call.1']
    #allocation4 [shape = 's32[1]{0}', space=sflag, size = 0x4, scoped, tag = 'scoped memory for tpu_custom_call.1']
    #allocation5 [shape = 's32[1]{0}', space=sflag, size = 0x4, scoped, tag = 'scoped memory for tpu_custom_call.1']
    #allocation6 [shape = 'u8[8192]{0}', space=vmem, size = 0x2000, scoped, tag = 'input window, operand 1, single buffered']
    #allocation7 [shape = 'u8[8192]{0}', space=vmem, size = 0x2000, scoped, tag = 'output window, operand 0, single buffered']
    %7 = vsyncpa [#allocation5], 0
    %8 = vsyncpa [#allocation3], 0
    %9 = vsyncpa [#allocation4], 0
    // Predicated region
    $region2: #{tpu_custom_call.1} parent=1 // pred_check
      _
    $region3: #{tpu_custom_call.1} parent=1 // pred_check_branch
      %11 = sbr.rel (0) target = $region5
    $region4: #{tpu_custom_call.1} parent=1 // pred_region
      %13 = vsyncadd [#allocation5], 0
      %s15 = sshll.u32 %s0, 4
      %s16 = int_to_ptr.hbm [resolvable:$true] %s15
      %18 = dma.hbm_to_smem %s16, 16, [#allocation2], [#allocation5]
    $region5: #{tpu_custom_call.1} parent=1 // pred_fallthru
      _
    // Predicated region
    $region6: #{tpu_custom_call.1} parent=1 // pred_check
      _
    $region7: #{tpu_custom_call.1} parent=1 // pred_check_branch
      %20 = sbr.rel (0) target = $region9
    $region8: #{tpu_custom_call.1} parent=1 // pred_region
      %22 = vsyncadd [#allocation3], 0
      %s24 = sshll.u32 %s1, 4
      %s25 = int_to_ptr.hbm [resolvable:$true] %s24
      %s26 = sshll.u32 [#allocation6], 4
      %s27 = int_to_ptr.vmem [resolvable:$true] %s26
      %29 = dma.hbm_to_vmem [thread:$0]  %s25, 256, %s27, [#allocation3]
    $region9: #{tpu_custom_call.1} parent=1 // pred_fallthru
      _
    // Predicated region
    $region10: #{tpu_custom_call.1} parent=1 // pred_check
      _
    $region11: #{tpu_custom_call.1} parent=1 // pred_check_branch
      %31 = sbr.rel (0) target = $region13
    $region12: #{tpu_custom_call.1} parent=1 // pred_region
      %33 = dma.done [#allocation5], 16
    $region13: #{tpu_custom_call.1} parent=1 // pred_fallthru
      _
    // Predicated region
    $region14: #{tpu_custom_call.1} parent=1 // pred_check
      _
    $region15: #{tpu_custom_call.1} parent=1 // pred_check_branch
      %35 = sbr.rel (0) target = $region17
    $region16: #{tpu_custom_call.1} parent=1 // pred_region
      %37 = dma.done [#allocation3], 256
    $region17: #{tpu_custom_call.1} parent=1 // pred_fallthru
      _
    %38 = sfence
    %s39 = sld [smem:[#allocation2]]
    %s40 = sld [smem:[#allocation2 + $0x1]]
    %s41 = sld [smem:[#allocation2 + $0x2]]
    %s42 = sld [smem:[#allocation2 + $0x3]]
    %v43 = vld [vmem:[#allocation6] sm:$0xff]
    %v44 = vld [vmem:[#allocation6 + $0x8] sm:$0xff]
    %v45 = vstv %s42
    %v46 = vmul.f32 %v43, %v45
    %v47 = vmul.f32 %v44, %v45
    %v48 = vstv %s41
    %v49 = vadd.f32 %v48, %v46
    %v50 = vadd.f32 %v48, %v47
    %v51 = vmul.f32 %v43, %v49
    %v52 = vmul.f32 %v44, %v50
    %v53 = vstv %s40
    %v54 = vadd.f32 %v53, %v51
    %v55 = vadd.f32 %v53, %v52
    %v56 = vmul.f32 %v43, %v54
    %v57 = vmul.f32 %v44, %v55
    %v58 = vstv %s39
    %v59 = vadd.f32 %v58, %v56
    %v60 = vadd.f32 %v58, %v57
    %61 = vst [vmem:[#allocation7] sm:$0xff] %v59
    %62 = vst [vmem:[#allocation7 + $0x8] sm:$0xff] %v60
    // Predicated region
    $region18: #{tpu_custom_call.1} parent=1 // pred_check
      _
    $region19: #{tpu_custom_call.1} parent=1 // pred_check_branch
      %64 = sbr.rel (0) target = $region21
    $region20: #{tpu_custom_call.1} parent=1 // pred_region
      %66 = vsyncadd [#allocation4], 0
      %s68 = sshll.u32 [#allocation7], 4
      %s69 = int_to_ptr.vmem [resolvable:$true] %s68
      %s70 = sshll.u32 %s2, 4
      %s71 = int_to_ptr.hbm [resolvable:$true] %s70
      %73 = dma.vmem_to_hbm [thread:$0]  %s69, 256, %s71, [#allocation4]
    $region21: #{tpu_custom_call.1} parent=1 // pred_fallthru
      _
    // Predicated region
    $region22: #{tpu_custom_call.1} parent=1 // pred_check
      _
    $region23: #{tpu_custom_call.1} parent=1 // pred_check_branch
      %75 = sbr.rel (0) target = $region25
    $region24: #{tpu_custom_call.1} parent=1 // pred_region
      %77 = dma.done [#allocation4], 256
    $region25: #{tpu_custom_call.1} parent=1 // pred_fallthru
      _
    %78 = vsyncpa [#allocation3], 1
    %79 = vsyncpa [#allocation4], 1
    %80 = vsyncpa [#allocation5], 1

</llo_original>
